<compile_context>
chip_gen: v6e
topology: v6e:2x2x1
jax: 0.10.0
libtpu: 0.0.40
codegen_flags: <defaults>
</compile_context>

<pallas_src>
import functools

import jax
import jax.numpy as jnp
from jax import lax
from jax.experimental import pallas as pl
from jax.experimental.pallas import tpu as pltpu

K = 128            # hidden width k from the module
K1 = K // 2        # fc1 / fc2 / fc3 output widths (k even)
IN_DIM = 6
OUT_DIM = 6

# Conservative VMEM bytes per batch element for compiler-materialized in-body
# temporaries: z (128 f32) + sin/h3 (64 f32 each) + their mxu-dtype copies +
# sliced views + double-buffered (tb, 6) I/O blocks  ~= 1.7 KB -> pad to 2 KB.
_VMEM_BYTES_PER_ELEM = 2048


@functools.lru_cache(maxsize=1)
def _vmem_capacity_bytes():
    """Physical per-core VMEM (generation dependent); conservative fallback."""
    try:
        info = pltpu.get_tpu_info()
        for name in ("vmem_capacity_bytes", "vmem_size_bytes", "vmem_bytes"):
            v = getattr(info, name, None)
            if v:
                return int(v)
    except Exception:
        pass
    return 64 * 1024 * 1024      # v7x per-TensorCore VMEM (smallest of the three)


def _round_up(x, m):
    return ((x + m - 1) // m) * m


def _pick_batch_tile(batch, tb_req, vmem_cap):
    """Batch tile (sublane extent of the x / y blocks)."""
    if batch <= 128:
        return batch                              # single exact block
    budget = int(vmem_cap * 0.6)                  # headroom for I/O buffers etc.
    tb_max = max(128, (budget // _VMEM_BYTES_PER_ELEM) // 128 * 128)
    tb = min(tb_req, tb_max, _round_up(batch, 128))
    # Keep >= 2 grid steps so ("parallel",) can shard work across both v7x
    # TensorCores (harmless on single-TC v5e/v6e).
    tb = min(tb, _round_up(pl.cdiv(_round_up(batch, 128), 2), 128))
    return max(tb, 128)


def temporal_vec_kernel(x_ref, waT_ref, baT_ref, w3bT_ref, w45_ref, b45_ref,
                        o_ref, *, mxu_dtype):
    # x tile arrives batch-major (TB, 6); cast once to the MXU operand dtype.
    xm = x_ref[...].astype(mxu_dtype)                            # (TB, 6)

    # z^T = Wa^T . x^T + Ba^T  ->  (128, TB): contract the feature dim (=6) of
    # both operands (A.B^T form).  Batch lands in lanes -> lane-dense temps.
    z = lax.dot_general(waT_ref[...], xm,
                        dimension_numbers=(((1,), (1,)), ((), ())),
                        preferred_element_type=jnp.float32)
    z = z + baT_ref[...]                                         # (128,1) lane-bcast bias

    z1 = z[:K1, :]                                               # fc1∘fc3a part (bias folded)
    s2 = jnp.sin(z[K1:, :])                                      # fc2 + sin, f32 VPU/EUP
    # d2 / d3 dropout are identity in eval mode.

    # h3^T = z1^T + W3b^T . sin(..)^T
    h3 = z1 + jnp.dot(w3bT_ref[...], s2.astype(mxu_dtype),
                      preferred_element_type=jnp.float32)        # (64, TB)

    # y = h3^T-contracted with W45 (+ b45): contract the 64-dim (axis 0 of
    # both) so the MXU emits batch-major (TB, 6) directly -> no transpose.
    y = lax.dot_general(h3.astype(mxu_dtype), w45_ref[...],
                        dimension_numbers=(((0,), (0,)), ((), ())),
                        preferred_element_type=jnp.float32)
    o_ref[...] = (y + b45_ref[...]).astype(o_ref.dtype)          # (TB, 6)


def prepare_params(params, mxu_dtype=jnp.bfloat16):
    """One-time host-side weight folding + pre-cast to the MXU operand dtype.

    params are (in_features, out_features) weights (transpose of the PyTorch
    Linear .weight) and (1, out_features) biases.  Returns:
      waT  (128, 6)  mxu_dtype : [W1@W3a | W2]^T
      baT  (128, 1)  f32       : [b1@W3a + b3 | b2]^T
      w3bT (64, 64)  mxu_dtype : W3b^T
      w45  (64, 6)   mxu_dtype : W4@W5
      b45  (1, 6)    f32       : b4@W5 + b5
    """
    (w1, b1, w2, b2, w3, b3, w4, b4, w5, b5) = params
    w3a, w3b = w3[:K1, :], w3[K1:, :]
    w13 = w1 @ w3a                               # (6, 64)   fc1 ∘ fc3a
    b13 = b1 @ w3a + b3                          # (1, 64)
    w45 = w4 @ w5                                # (64, 6)   fc4 ∘ fc5
    b45 = b4 @ w5 + b5                           # (1, 6)
    wa = jnp.concatenate([w13, w2], axis=1)      # (6, 128)  fused 6->128 matmul
    ba = jnp.concatenate([b13, b2], axis=1)      # (1, 128)
    return (wa.T.astype(mxu_dtype), ba.T.astype(jnp.float32),
            w3b.T.astype(mxu_dtype), w45.astype(mxu_dtype),
            b45.astype(jnp.float32))


@functools.partial(jax.jit, static_argnames=("tb_eff", "vmem_limit"))
def _forward(x, kparams, *, tb_eff, vmem_limit):
    waT, baT, w3bT, w45, b45 = kparams
    B = x.shape[0]
    grid = (pl.cdiv(B, tb_eff),)                 # ragged last block is masked
    mxu_dtype = waT.dtype
    const = lambda i: (0, 0)                     # weights stay VMEM-resident
    return pl.pallas_call(
        functools.partial(temporal_vec_kernel, mxu_dtype=mxu_dtype),
        out_shape=jax.ShapeDtypeStruct((B, OUT_DIM), jnp.float32),
        grid=grid,
        in_specs=[
            pl.BlockSpec((tb_eff, IN_DIM), lambda i: (i, 0)),   # x tile (no host transpose/pad)
            pl.BlockSpec((K, IN_DIM), const),                   # Wa^T
            pl.BlockSpec((K, 1), const),                        # Ba^T
            pl.BlockSpec((K1, K1), const),                      # W3b^T
            pl.BlockSpec((K1, OUT_DIM), const),                 # W4@W5
            pl.BlockSpec((1, OUT_DIM), const),                  # b4@W5 + b5
        ],
        out_specs=pl.BlockSpec((tb_eff, OUT_DIM), lambda i: (i, 0)),
        compiler_params=pltpu.CompilerParams(
            dimension_semantics=("parallel",),    # batch axis across v7x cores
            vmem_limit_bytes=vmem_limit),
    )(x, waT, baT, w3bT, w45, b45)


def temporal_vec_forward(x, kparams, *, tb=8192):
    """TemporalVec forward (eval mode). x: (B, 6) -> (B, 6) float32.

    `tb` is the requested batch tile; it is capped per TPU generation so the
    in-body temporaries (+ double-buffered I/O blocks) fit VMEM with headroom.
    Sweep tb in 4096..16384 for peak throughput at large B.
    """
    cap = _vmem_capacity_bytes()
    tb_eff = _pick_batch_tile(x.shape[0], tb, cap)
    vmem_limit = min(int(cap * 0.85), 120 * 1024 * 1024)
    return _forward(x, kparams, tb_eff=tb_eff, vmem_limit=vmem_limit)


def init_params(key):
    """torch.nn.Linear-style init (uniform +/- 1/sqrt(fan_in)).

    Weights in (in_features, out_features) layout; biases as (1, out)."""
    def linear(key, fan_in, fan_out):
        kw, kb = jax.random.split(key)
        bound = 1.0 / jnp.sqrt(fan_in)
        w = jax.random.uniform(kw, (fan_in, fan_out), jnp.float32, -bound, bound)
        b = jax.random.uniform(kb, (1, fan_out), jnp.float32, -bound, bound)
        return w, b

    keys = jax.random.split(key, 5)
    w1, b1 = linear(keys[0], IN_DIM, K1)        # fc1: 6 -> k1
    w2, b2 = linear(keys[1], IN_DIM, K1)        # fc2: 6 -> k2
    w3, b3 = linear(keys[2], K, K // 2)         # fc3: k -> k//2
    w4, b4 = linear(keys[3], K // 2, OUT_DIM)   # fc4: k//2 -> 6
    w5, b5 = linear(keys[4], OUT_DIM, OUT_DIM)  # fc5: 6 -> 6
    return (w1, b1, w2, b2, w3, b3, w4, b4, w5, b5)


def reference_forward(x, params):
    """Plain-JAX reference matching the PyTorch forward (eval mode)."""
    (w1, b1, w2, b2, w3, b3, w4, b4, w5, b5) = params
    out1 = x @ w1 + b1
    out2 = jnp.sin(x @ w2 + b2)                 # d2 = identity (eval)
    out = jnp.concatenate([out1, out2], axis=1)
    out = out @ w3 + b3                         # d3 = identity (eval)
    out = out @ w4 + b4
    out = out @ w5 + b5
    return out


if __name__ == "__main__":
    key = jax.random.PRNGKey(0)
    k_x, k_p = jax.random.split(key)

    params = init_params(k_p)
    kparams_f32 = prepare_params(params, mxu_dtype=jnp.float32)  # accuracy path
    kparams_bf16 = prepare_params(params)                        # default perf path

    # Small demo batch (single exact block).
    B = 16
    x = jax.random.normal(k_x, (B, IN_DIM), jnp.float32)
    y_ref = reference_forward(x, params)

    y = temporal_vec_forward(x, kparams_f32)
    jax.block_until_ready(y)
    assert y.shape == (B, OUT_DIM)
    assert jnp.allclose(y, y_ref, atol=1e-4, rtol=1e-4), "f32 kernel mismatch vs reference"

    # Ragged batch (not a tile multiple): exercises Pallas boundary masking and
    # the >=2-step grid (no host-side pad / transpose passes).
    B2 = 300
    x2 = jax.random.normal(jax.random.PRNGKey(1), (B2, IN_DIM), jnp.float32)
    y2_ref = reference_forward(x2, params)
    y2 = temporal_vec_forward(x2, kparams_f32)
    jax.block_until_ready(y2)
    assert jnp.allclose(y2, y2_ref, atol=1e-4, rtol=1e-4), \
        "f32 kernel mismatch vs reference (ragged batch)"

    # bf16-at-the-MXU default path (f32 accumulation, f32 sin/epilogue).
    y2_bf16 = temporal_vec_forward(x2, kparams_bf16)
    jax.block_until_ready(y2_bf16)
    assert jnp.allclose(y2_bf16, y2_ref, atol=1e-1, rtol=1e-1), \
        "bf16 kernel drift too large"

    print("KERNEL_OK")
</pallas_src>

<mosaic_0001>
module attributes {stable_mosaic.version = 11 : i64} {
  func.func @temporal_vec_kernel(%arg0: i32, %arg1: memref<16x6xf32, #tpu.memory_space<vmem>>, %arg2: memref<128x6xf32, #tpu.memory_space<vmem>>, %arg3: memref<128x1xf32, #tpu.memory_space<vmem>>, %arg4: memref<64x64xf32, #tpu.memory_space<vmem>>, %arg5: memref<64x6xf32, #tpu.memory_space<vmem>>, %arg6: memref<1x6xf32, #tpu.memory_space<vmem>>, %arg7: memref<16x6xf32, #tpu.memory_space<vmem>>) attributes {dimension_semantics = [#tpu.dimension_semantics<parallel>], iteration_bounds = array<i64: 1>, scalar_prefetch = 0 : i64, scratch_operands = 0 : i64, tpu.core_type = #tpu.core_type<tc>, window_params = [{transform_indices = @transform_0, window_bounds = array<i64: 16, 6>}, {pipeline_mode = #tpu.pipeline_mode<synchronous>, transform_indices = @transform_1, window_bounds = array<i64: 128, 6>}, {pipeline_mode = #tpu.pipeline_mode<synchronous>, transform_indices = @transform_2, window_bounds = array<i64: 128, 1>}, {pipeline_mode = #tpu.pipeline_mode<synchronous>, transform_indices = @transform_3, window_bounds = array<i64: 64, 64>}, {pipeline_mode = #tpu.pipeline_mode<synchronous>, transform_indices = @transform_4, window_bounds = array<i64: 64, 6>}, {pipeline_mode = #tpu.pipeline_mode<synchronous>, transform_indices = @transform_5, window_bounds = array<i64: 1, 6>}, {transform_indices = @transform_6, window_bounds = array<i64: 16, 6>}]} {
    %c0 = arith.constant 0 : index
    %c0_0 = arith.constant 0 : index
    %0 = vector.load %arg1[%c0, %c0_0] : memref<16x6xf32, #tpu.memory_space<vmem>>, vector<16x6xf32>
    %c0_1 = arith.constant 0 : index
    %c0_2 = arith.constant 0 : index
    %1 = vector.load %arg2[%c0_1, %c0_2] : memref<128x6xf32, #tpu.memory_space<vmem>>, vector<128x6xf32>
    %cst = arith.constant dense<0.000000e+00> : vector<128x16xf32>
    %2 = tpu.matmul %1, %0, %cst {dimension_numbers = #tpu.dot_dimension_numbers<[1], [1], [0], [0], [0, 0, 1, 0], [], []>} : vector<128x6xf32>, vector<16x6xf32>, vector<128x16xf32> -> vector<128x16xf32>
    %c0_3 = arith.constant 0 : index
    %c0_4 = arith.constant 0 : index
    %3 = vector.load %arg3[%c0_3, %c0_4] : memref<128x1xf32, #tpu.memory_space<vmem>>, vector<128x1xf32>
    %4 = vector.broadcast %3 : vector<128x1xf32> to vector<128x16xf32>
    %5 = arith.addf %2, %4 : vector<128x16xf32>
    %6 = vector.extract_strided_slice %5 {offsets = [0, 0], sizes = [64, 16], strides = [1, 1]} : vector<128x16xf32> to vector<64x16xf32>
    %7 = vector.extract_strided_slice %5 {offsets = [64, 0], sizes = [64, 16], strides = [1, 1]} : vector<128x16xf32> to vector<64x16xf32>
    %8 = math.sin %7 : vector<64x16xf32>
    %c0_5 = arith.constant 0 : index
    %c0_6 = arith.constant 0 : index
    %9 = vector.load %arg4[%c0_5, %c0_6] : memref<64x64xf32, #tpu.memory_space<vmem>>, vector<64x64xf32>
    %cst_7 = arith.constant dense<0.000000e+00> : vector<64x16xf32>
    %10 = tpu.matmul %9, %8, %cst_7 {dimension_numbers = #tpu.dot_dimension_numbers<[1], [0], [0], [1], [0, 0, 1, 1], [], []>} : vector<64x64xf32>, vector<64x16xf32>, vector<64x16xf32> -> vector<64x16xf32>
    %11 = arith.addf %6, %10 : vector<64x16xf32>
    %c0_8 = arith.constant 0 : index
    %c0_9 = arith.constant 0 : index
    %12 = vector.load %arg5[%c0_8, %c0_9] : memref<64x6xf32, #tpu.memory_space<vmem>>, vector<64x6xf32>
    %cst_10 = arith.constant dense<0.000000e+00> : vector<16x6xf32>
    %13 = tpu.matmul %11, %12, %cst_10 {dimension_numbers = #tpu.dot_dimension_numbers<[0], [0], [1], [1], [0, 1, 1, 1], [], []>} : vector<64x16xf32>, vector<64x6xf32>, vector<16x6xf32> -> vector<16x6xf32>
    %c0_11 = arith.constant 0 : index
    %c0_12 = arith.constant 0 : index
    %14 = vector.load %arg6[%c0_11, %c0_12] : memref<1x6xf32, #tpu.memory_space<vmem>>, vector<1x6xf32>
    %15 = vector.broadcast %14 : vector<1x6xf32> to vector<16x6xf32>
    %16 = arith.addf %13, %15 : vector<16x6xf32>
    %c0_13 = arith.constant 0 : index
    %c0_14 = arith.constant 0 : index
    %17 = vector.load %arg7[%c0_13, %c0_14] : memref<16x6xf32, #tpu.memory_space<vmem>>, vector<16x6xf32>
    tpu.vector_store %arg7[%c0_13, %c0_14], %16 {strides = array<i32>} : memref<16x6xf32, #tpu.memory_space<vmem>>, vector<16x6xf32>,
    return
  }
  func.func @transform_0(%arg0: i32) -> (i32, i32) {
    %c0_i32 = arith.constant 0 : i32
    %c0_i32_0 = arith.constant 0 : i32
    return %arg0, %c0_i32 : i32, i32
  }
  func.func @transform_1(%arg0: i32) -> (i32, i32) {
    %c0_i32 = arith.constant 0 : i32
    %c0_i32_0 = arith.constant 0 : i32
    %c0_i32_1 = arith.constant 0 : i32
    return %c0_i32, %c0_i32_0 : i32, i32
  }
  func.func @transform_2(%arg0: i32) -> (i32, i32) {
    %c0_i32 = arith.constant 0 : i32
    %c0_i32_0 = arith.constant 0 : i32
    %c0_i32_1 = arith.constant 0 : i32
    return %c0_i32, %c0_i32_0 : i32, i32
  }
  func.func @transform_3(%arg0: i32) -> (i32, i32) {
    %c0_i32 = arith.constant 0 : i32
    %c0_i32_0 = arith.constant 0 : i32
    %c0_i32_1 = arith.constant 0 : i32
    return %c0_i32, %c0_i32_0 : i32, i32
  }
  func.func @transform_4(%arg0: i32) -> (i32, i32) {
    %c0_i32 = arith.constant 0 : i32
    %c0_i32_0 = arith.constant 0 : i32
    %c0_i32_1 = arith.constant 0 : i32
    return %c0_i32, %c0_i32_0 : i32, i32
  }
  func.func @transform_5(%arg0: i32) -> (i32, i32) {
    %c0_i32 = arith.constant 0 : i32
    %c0_i32_0 = arith.constant 0 : i32
    %c0_i32_1 = arith.constant 0 : i32
    return %c0_i32, %c0_i32_0 : i32, i32
  }
  func.func @transform_6(%arg0: i32) -> (i32, i32) {
    %c0_i32 = arith.constant 0 : i32
    %c0_i32_0 = arith.constant 0 : i32
    return %arg0, %c0_i32 : i32, i32
  }
}

</mosaic_0001>

<llo_original>
// kernel: _forward.1
$region0: #{_forward.1}
  #allocation0 [shape = 'u32[]', space=smem, size = 0x4, offset = 0x4, fixed_abs, tag = 'smem constant byte address 0x4 - core index']
  #allocation1 [shape = 'u32[144,128]{1,0:T(1,128)}', space=vmem, size = 0x12000, scoped, tag = 'internal scratch']
  %s0 = inlined_call_operand.vmem [shape: f32[16,6], index: 0, kind: input, shape index: {}]
  %s1 = inlined_call_operand.vmem [shape: f32[128,6], index: 1, kind: input, shape index: {}]
  %s2 = inlined_call_operand.vmem [shape: f32[128,1], index: 2, kind: input, shape index: {}]
  %s3 = inlined_call_operand.vmem [shape: f32[64,64], index: 3, kind: input, shape index: {}]
  %s4 = inlined_call_operand.vmem [shape: f32[64,6], index: 4, kind: input, shape index: {}]
  %s5 = inlined_call_operand.vmem [shape: f32[1,6], index: 5, kind: input, shape index: {}]
  %s6 = inlined_call_operand.vmem [shape: f32[16,6], index: 6, kind: output, shape index: {}]
  %s7 = sld [smem:[#allocation0]]
  $region34: #{_forward.1} parent=0
    _
  %s9 = ssub.s32 1, %s7
  %s10 = scalar_select 0, %s9, %s7
  // Predicated region
  $region2: #{_forward.1} parent=0 // pred_check
    _
  $region3: #{_forward.1} parent=0 // pred_check_branch
    %12 = sbr.rel (0) target = $region5
  $region4: #{_forward.1} parent=0 // pred_region
    _
  $region5: #{_forward.1} parent=0 // pred_fallthru
    _
  // Predicated region
  $region6: #{_forward.1} parent=0 // pred_check
    _
  $region7: #{_forward.1} parent=0 // pred_check_branch
    %14 = sbr.rel (0) target = $region9
  $region8: #{_forward.1} parent=0 // pred_region
    _
  $region9: #{_forward.1} parent=0 // pred_fallthru
    _
  // Predicated region
  $region10: #{_forward.1} parent=0 // pred_check
    _
  $region11: #{_forward.1} parent=0 // pred_check_branch
    %16 = sbr.rel (0) target = $region13
  $region12: #{_forward.1} parent=0 // pred_region
    _
  $region13: #{_forward.1} parent=0 // pred_fallthru
    _
  // Predicated region
  $region14: #{_forward.1} parent=0 // pred_check
    _
  $region15: #{_forward.1} parent=0 // pred_check_branch
    %18 = sbr.rel (0) target = $region17
  $region16: #{_forward.1} parent=0 // pred_region
    _
  $region17: #{_forward.1} parent=0 // pred_fallthru
    _
  // Predicated region
  $region18: #{_forward.1} parent=0 // pred_check
    _
  $region19: #{_forward.1} parent=0 // pred_check_branch
    %20 = sbr.rel (0) target = $region21
  $region20: #{_forward.1} parent=0 // pred_region
    _
  $region21: #{_forward.1} parent=0 // pred_fallthru
    _
  // Predicated region
  $region22: #{_forward.1} parent=0 // pred_check
    _
  $region23: #{_forward.1} parent=0 // pred_check_branch
    %22 = sbr.rel (0) target = $region25
  $region24: #{_forward.1} parent=0 // pred_region
    _
  $region25: #{_forward.1} parent=0 // pred_fallthru
    _
  %v23 = vld [vmem:[%s0] sm:$0xff]
  %v24 = vld [vmem:[%s0 + $0x8] sm:$0xff]
  %v25 = vld [vmem:[%s1] sm:$0xff]
  %v26 = vld [vmem:[%s1 + $0x8] sm:$0xff]
  %v27 = vld [vmem:[%s1 + $0x10] sm:$0xff]
  %v28 = vld [vmem:[%s1 + $0x18] sm:$0xff]
  %v29 = vld [vmem:[%s1 + $0x20] sm:$0xff]
  %v30 = vld [vmem:[%s1 + $0x28] sm:$0xff]
  %v31 = vld [vmem:[%s1 + $0x30] sm:$0xff]
  %v32 = vld [vmem:[%s1 + $0x38] sm:$0xff]
  %v33 = vld [vmem:[%s1 + $0x40] sm:$0xff]
  %v34 = vld [vmem:[%s1 + $0x48] sm:$0xff]
  %v35 = vld [vmem:[%s1 + $0x50] sm:$0xff]
  %v36 = vld [vmem:[%s1 + $0x58] sm:$0xff]
  %v37 = vld [vmem:[%s1 + $0x60] sm:$0xff]
  %v38 = vld [vmem:[%s1 + $0x68] sm:$0xff]
  %v39 = vld [vmem:[%s1 + $0x70] sm:$0xff]
  %v40 = vld [vmem:[%s1 + $0x78] sm:$0xff]
  %v41 = vld [vmem:[%s2] sm:$0xff]
  %v42 = vld [vmem:[%s2 + $0x8] sm:$0xff]
  %v43 = vld [vmem:[%s2 + $0x10] sm:$0xff]
  %v44 = vld [vmem:[%s2 + $0x18] sm:$0xff]
  %v45 = vld [vmem:[%s2 + $0x20] sm:$0xff]
  %v46 = vld [vmem:[%s2 + $0x28] sm:$0xff]
  %v47 = vld [vmem:[%s2 + $0x30] sm:$0xff]
  %v48 = vld [vmem:[%s2 + $0x38] sm:$0xff]
  %v49 = vld [vmem:[%s2 + $0x40] sm:$0xff]
  %v50 = vld [vmem:[%s2 + $0x48] sm:$0xff]
  %v51 = vld [vmem:[%s2 + $0x50] sm:$0xff]
  %v52 = vld [vmem:[%s2 + $0x58] sm:$0xff]
  %v53 = vld [vmem:[%s2 + $0x60] sm:$0xff]
  %v54 = vld [vmem:[%s2 + $0x68] sm:$0xff]
  %v55 = vld [vmem:[%s2 + $0x70] sm:$0xff]
  %v56 = vld [vmem:[%s2 + $0x78] sm:$0xff]
  %58 = vset.pattern.permute.xlu0 0
  %59 = vperm.xlu0 %58, %v41
  %v60 = vpop.permute.xlu0 %59
  %63 = vset.pattern.permute.xlu0 0
  %64 = vperm.xlu0 %63, %v42
  %v65 = vpop.permute.xlu0 %64
  %68 = vset.pattern.permute.xlu0 0
  %69 = vperm.xlu0 %68, %v43
  %v70 = vpop.permute.xlu0 %69
  %73 = vset.pattern.permute.xlu0 0
  %74 = vperm.xlu0 %73, %v44
  %v75 = vpop.permute.xlu0 %74
  %78 = vset.pattern.permute.xlu0 0
  %79 = vperm.xlu0 %78, %v45
  %v80 = vpop.permute.xlu0 %79
  %83 = vset.pattern.permute.xlu0 0
  %84 = vperm.xlu0 %83, %v46
  %v85 = vpop.permute.xlu0 %84
  %88 = vset.pattern.permute.xlu0 0
  %89 = vperm.xlu0 %88, %v47
  %v90 = vpop.permute.xlu0 %89
  %93 = vset.pattern.permute.xlu0 0
  %94 = vperm.xlu0 %93, %v48
  %v95 = vpop.permute.xlu0 %94
  %98 = vset.pattern.permute.xlu0 0
  %99 = vperm.xlu0 %98, %v49
  %v100 = vpop.permute.xlu0 %99
  %103 = vset.pattern.permute.xlu0 0
  %104 = vperm.xlu0 %103, %v50
  %v105 = vpop.permute.xlu0 %104
  %108 = vset.pattern.permute.xlu0 0
  %109 = vperm.xlu0 %108, %v51
  %v110 = vpop.permute.xlu0 %109
  %113 = vset.pattern.permute.xlu0 0
  %114 = vperm.xlu0 %113, %v52
  %v115 = vpop.permute.xlu0 %114
  %118 = vset.pattern.permute.xlu0 0
  %119 = vperm.xlu0 %118, %v53
  %v120 = vpop.permute.xlu0 %119
  %123 = vset.pattern.permute.xlu0 0
  %124 = vperm.xlu0 %123, %v54
  %v125 = vpop.permute.xlu0 %124
  %128 = vset.pattern.permute.xlu0 0
  %129 = vperm.xlu0 %128, %v55
  %v130 = vpop.permute.xlu0 %129
  %133 = vset.pattern.permute.xlu0 0
  %134 = vperm.xlu0 %133, %v56
  %v135 = vpop.permute.xlu0 %134
  %vm137 = vcmask 48128
  %v139 = vsel %vm137, %v25, 0
  %v142 = vsel %vm137, %v26, 0
  %v145 = vsel %vm137, %v27, 0
  %v148 = vsel %vm137, %v28, 0
  %v151 = vsel %vm137, %v29, 0
  %v154 = vsel %vm137, %v30, 0
  %v157 = vsel %vm137, %v31, 0
  %v160 = vsel %vm137, %v32, 0
  %v163 = vsel %vm137, %v33, 0
  %v166 = vsel %vm137, %v34, 0
  %v169 = vsel %vm137, %v35, 0
  %v172 = vsel %vm137, %v36, 0
  %v175 = vsel %vm137, %v37, 0
  %v178 = vsel %vm137, %v38, 0
  %v181 = vsel %vm137, %v39, 0
  %v184 = vsel %vm137, %v40, 0
  %v187 = vsel %vm137, %v23, 0
  %v190 = vsel %vm137, %v24, 0
  %192 = vmatprep.subr.mxu0 0.0
  %193 = vmatpush1.xpose.msra.mxu0 0.0
  %194 = vmatprep.subr.mxu0 0.0
  %195 = vmatpush1.xpose.msra.mxu0 0.0
  %196 = vmatprep.subr.mxu0 0.0
  %197 = vmatpush1.xpose.msra.mxu0 0.0
  %198 = vmatprep.subr.mxu0 0.0
  %199 = vmatpush1.xpose.msra.mxu0 0.0
  %200 = vmatprep.subr.mxu0 0.0
  %201 = vmatpush1.xpose.msra.mxu0 0.0
  %202 = vmatprep.subr.mxu0 0.0
  %203 = vmatpush1.xpose.msra.mxu0 0.0
  %204 = vmatprep.subr.mxu0 0.0
  %205 = vmatpush1.xpose.msra.mxu0 0.0
  %206 = vmatprep.subr.mxu0 0.0
  %207 = vmatpush1.xpose.msra.mxu0 0.0
  %208 = vmatprep.subr.mxu0 0.0
  %209 = vmatpush1.xpose.msra.mxu0 0.0
  %210 = vmatprep.subr.mxu0 0.0
  %211 = vmatpush1.xpose.msra.mxu0 0.0
  %212 = vmatprep.subr.mxu0 0.0
  %213 = vmatpush1.xpose.msra.mxu0 0.0
  %214 = vmatprep.subr.mxu0 0.0
  %215 = vmatpush1.xpose.msra.mxu0 0.0
  %216 = vmatprep.subr.mxu0 0.0
  %217 = vmatpush1.xpose.msra.mxu0 0.0
  %218 = vmatprep.subr.mxu0 0.0
  %219 = vmatpush1.xpose.msra.mxu0 0.0
  %220 = vmatprep.subr.mxu0 0.0
  %221 = vmatpush1.xpose.msra.mxu0 %v190
  %222 = vmatprep.subr.mxu0 0.0
  %223 = vmatpush1.xpose.msra.mxu0 %v187
  %224 = vmatprep.subr.mxu0 0.0
  %225 = vmatpush2.xpose.msra.mxu0 0.0
  %226 = vmatprep.subr.mxu0 0.0
  %227 = vmatpush2.xpose.msra.mxu0 0.0
  %228 = vmatprep.subr.mxu0 0.0
  %229 = vmatpush2.xpose.msra.mxu0 0.0
  %230 = vmatprep.subr.mxu0 0.0
  %231 = vmatpush2.xpose.msra.mxu0 0.0
  %232 = vmatprep.subr.mxu0 0.0
  %233 = vmatpush2.xpose.msra.mxu0 0.0
  %234 = vmatprep.subr.mxu0 0.0
  %235 = vmatpush2.xpose.msra.mxu0 0.0
  %236 = vmatprep.subr.mxu0 0.0
  %237 = vmatpush2.xpose.msra.mxu0 0.0
  %238 = vmatprep.subr.mxu0 0.0
  %239 = vmatpush2.xpose.msra.mxu0 0.0
  %240 = vmatprep.subr.mxu0 0.0
  %241 = vmatpush2.xpose.msra.mxu0 0.0
  %242 = vmatprep.subr.mxu0 0.0
  %243 = vmatpush2.xpose.msra.mxu0 0.0
  %244 = vmatprep.subr.mxu0 0.0
  %245 = vmatpush2.xpose.msra.mxu0 0.0
  %246 = vmatprep.subr.mxu0 0.0
  %247 = vmatpush2.xpose.msra.mxu0 0.0
  %248 = vmatprep.subr.mxu0 0.0
  %249 = vmatpush2.xpose.msra.mxu0 0.0
  %250 = vmatprep.subr.mxu0 0.0
  %251 = vmatpush2.xpose.msra.mxu0 0.0
  %252 = vmatprep.subr.mxu0 0.0
  %253 = vmatpush2.xpose.msra.mxu0 0.0
  %254 = vmatprep.subr.mxu0 0.0
  %255 = vmatpush2.xpose.msra.mxu0 0.0
  %256 = vmatprep.mubr.f32.mxu0 0.0
  %257 = vmatmul.mubr.f32.gmra.mxu0 %v139
  %v258 = vpop.f32.mrf.mxu0
  %v259 = vadd.f32 %v60, %v258
  %v260 = vpop.f32.mrf.mxu0
  %261 = vmatprep.mubr.f32.mxu0 0.0
  %262 = vmatmul.mubr.f32.gmra.mxu0 %v142
  %v263 = vpop.f32.mrf.mxu0
  %v264 = vadd.f32 %v65, %v263
  %v265 = vpop.f32.mrf.mxu0
  %266 = vmatprep.mubr.f32.mxu0 0.0
  %267 = vmatmul.mubr.f32.gmra.mxu0 %v145
  %v268 = vpop.f32.mrf.mxu0
  %v269 = vadd.f32 %v70, %v268
  %v270 = vpop.f32.mrf.mxu0
  %271 = vmatprep.mubr.f32.mxu0 0.0
  %272 = vmatmul.mubr.f32.gmra.mxu0 %v148
  %v273 = vpop.f32.mrf.mxu0
  %v274 = vadd.f32 %v75, %v273
  %v275 = vpop.f32.mrf.mxu0
  %276 = vmatprep.mubr.f32.mxu0 0.0
  %277 = vmatmul.mubr.f32.gmra.mxu0 %v151
  %v278 = vpop.f32.mrf.mxu0
  %v279 = vadd.f32 %v80, %v278
  %v280 = vpop.f32.mrf.mxu0
  %281 = vmatprep.mubr.f32.mxu0 0.0
  %282 = vmatmul.mubr.f32.gmra.mxu0 %v154
  %v283 = vpop.f32.mrf.mxu0
  %v284 = vadd.f32 %v85, %v283
  %v285 = vpop.f32.mrf.mxu0
  %286 = vmatprep.mubr.f32.mxu0 0.0
  %287 = vmatmul.mubr.f32.gmra.mxu0 %v157
  %v288 = vpop.f32.mrf.mxu0
  %v289 = vadd.f32 %v90, %v288
  %v290 = vpop.f32.mrf.mxu0
  %291 = vmatprep.mubr.f32.mxu0 0.0
  %292 = vmatmul.mubr.f32.gmra.mxu0 %v160
  %v293 = vpop.f32.mrf.mxu0
  %v294 = vadd.f32 %v95, %v293
  %v295 = vpop.f32.mrf.mxu0
  %296 = vmatprep.mubr.f32.mxu0 0.0
  %297 = vmatmul.mubr.f32.gmra.mxu0 %v163
  %v298 = vpop.f32.mrf.mxu0
  %v299 = vadd.f32 %v100, %v298
  %v300 = vpop.f32.mrf.mxu0
  %301 = vmatprep.mubr.f32.mxu0 0.0
  %302 = vmatmul.mubr.f32.gmra.mxu0 %v166
  %v303 = vpop.f32.mrf.mxu0
  %v304 = vadd.f32 %v105, %v303
  %v305 = vpop.f32.mrf.mxu0
  %306 = vmatprep.mubr.f32.mxu0 0.0
  %307 = vmatmul.mubr.f32.gmra.mxu0 %v169
  %v308 = vpop.f32.mrf.mxu0
  %v309 = vadd.f32 %v110, %v308
  %v310 = vpop.f32.mrf.mxu0
  %311 = vmatprep.mubr.f32.mxu0 0.0
  %312 = vmatmul.mubr.f32.gmra.mxu0 %v172
  %v313 = vpop.f32.mrf.mxu0
  %v314 = vadd.f32 %v115, %v313
  %v315 = vpop.f32.mrf.mxu0
  %316 = vmatprep.mubr.f32.mxu0 0.0
  %317 = vmatmul.mubr.f32.gmra.mxu0 %v175
  %v318 = vpop.f32.mrf.mxu0
  %v319 = vadd.f32 %v120, %v318
  %v320 = vpop.f32.mrf.mxu0
  %321 = vmatprep.mubr.f32.mxu0 0.0
  %322 = vmatmul.mubr.f32.gmra.mxu0 %v178
  %v323 = vpop.f32.mrf.mxu0
  %v324 = vadd.f32 %v125, %v323
  %v325 = vpop.f32.mrf.mxu0
  %326 = vmatprep.mubr.f32.mxu0 0.0
  %327 = vmatmul.mubr.f32.gmra.mxu0 %v181
  %v328 = vpop.f32.mrf.mxu0
  %v329 = vadd.f32 %v130, %v328
  %v330 = vpop.f32.mrf.mxu0
  %331 = vmatprep.mubr.f32.mxu0 0.0
  %332 = vmatmul.mubr.f32.gmra.mxu0 %v184
  %v333 = vpop.f32.mrf.mxu0
  %v334 = vadd.f32 %v135, %v333
  %v335 = vpop.f32.mrf.mxu0
  %336 = vdwg.mxu0
  %v337 = vand.u32 2147483647, %v299
  %vm338 = vcmp.le.f32.partialorder %v337, 0.7853982
  %vm339 = vcmp.lt.s32.totalorder %v299, 0
  %v340 = vand.u32 %v299, 2139095040
  %v341 = vshrl.u32 %v340, 23
  %v342 = vsub.s32 %v341, 127
  %v343 = vand.u32 2147483647, %v299
  %v344 = vand.u32 %v343, 8388607
  %v345 = vor.u32 %v344, 8388608
  %v346 = vsub.s32 0, %v345
  %v347 = vadd.s32 %v342, 1
  %vm348 = vcmp.gt.s32.totalorder %v347, 0
  %v349 = vsel %vm348, %v347, 0
  %v350 = vshrl.u32 %v349, 5
  %v351 = vand.u32 %v349, 31
  %v352 = vsub.s32 32, %v351
  %v353 = vshrl.u32 683565275, %v352
  %v354 = vshll.u32 683565275, %v351
  %v355 = vshrl.u32 2475754826, %v352
  %v356 = vor.u32 %v354, %v355
  %v357 = vshll.u32 2475754826, %v351
  %v358 = vshrl.u32 2131351028, %v352
  %v359 = vor.u32 %v357, %v358
  %v360 = vshll.u32 2131351028, %v351
  %v361 = vshrl.u32 2102212464, %v352
  %v362 = vor.u32 %v360, %v361
  %v363 = vshll.u32 2102212464, %v351
  %v364 = vshrl.u32 920167782, %v352
  %v365 = vor.u32 %v363, %v364
  %v366 = vshll.u32 920167782, %v351
  %v367 = vshrl.u32 1326507024, %v352
  %v368 = vor.u32 %v366, %v367
  %vm369 = vcmp.lt.s32.totalorder %v350, 1
  %vm370 = vcmp.lt.s32.totalorder %v350, 2
  %vm371 = vcmp.lt.s32.totalorder %v350, 3
  %vm372 = vcmp.lt.s32.totalorder %v350, 4
  %v373 = vsel %vm369, %v353, %v356
  %v374 = vsel %vm372, %v362, 2102212464
  %v375 = vsel %vm371, %v359, %v374
  %v376 = vsel %vm370, %v373, %v375
  %v377 = vsel %vm369, %v356, %v359
  %v378 = vsel %vm372, %v365, 920167782
  %v379 = vsel %vm371, %v362, %v378
  %v380 = vsel %vm370, %v377, %v379
  %v381 = vsel %vm369, %v359, %v362
  %v382 = vsel %vm372, %v368, 1326507024
  %v383 = vsel %vm371, %v365, %v382
  %v384 = vsel %vm370, %v381, %v383
  %v385 = vshll.u32 %v345, 8
  %v386 = vmul.u32.u64.compose %v385, %v384
  %v387 = vextract.low.u32 %v386
  %v388 = vextract.high.u32 %v386
  %v389 = vmul.u32.u64.compose %v385, %v380
  %v390 = vextract.low.u32 %v389
  %v391 = vextract.high.u32 %v389
  %v392 = vmul.u32 %v385, %v376
  %v393 = vadd.s32 %v388, %v390
  %vm394 = vc.u32 %v388, %v390
  %v395 = vadd.s32 %v391, 1
  %v396 = vsel %vm394, %v395, %v391
  %v397 = vadd.s32 %v392, %v396
  %v398 = vadd.s32 %v397, 536870912
  %v399 = vshrl.u32 %v398, 30
  %v400 = vshll.u32 %v399, 30
  %v401 = vsub.s32 %v397, %v400
  %vm402 = vcmp.lt.s32.totalorder %v401, 0
  %v403 = vsub.s32 0, %v401
  %v404 = vsel %vm402, %v403, %v401
  %v405 = vclz %v404
  %v406 = vsub.s32 %v405, 2
  %vm407 = vcmp.gt.s32.totalorder 0, %v406
  %v408 = vsel %vm407, 0, %v406
  %v409 = vsub.s32 32, %v408
  %v410 = vshll.u32 %v401, %v408
  %v411 = vshrl.u32 %v393, %v409
  %v412 = vor.u32 %v410, %v411
  %v413 = vsub.s32 4294967266, %v408
  %v414 = vadd.s32 %v413, 127
  %v415 = vshll.u32 %v414, 23
  %v416 = vor.u32 4788187, %v415
  %v417 = vand.u32 2147483647, %v416
  %v419 = vcvt.s32.f32 %v412
  %v420 = vmul.f32 %v419, %v417
  %v421 = vxor.u32 %v420, 2147483648
  %v422 = vsel %vm339, %v421, %v420
  %v423 = vsub.s32 4, %v399
  %v424 = vsel %vm339, %v423, %v399
  %v425 = vsel %vm338, %v299, %v422
  %v426 = vsel %vm338, 0, %v424
  %v427 = vcosq.f32.pop %v425
  %v428 = vsinq.f32.pop %v425
  %vm429 = vweird.f32 %v299
  %v430 = vadd.s32 %v426, 3
  %v431 = vand.u32 %v430, 3
  %vm432 = vcmp.lt.s32.totalorder %v431, 2
  %vm433 = vcmp.eq.s32.totalorder %v431, 0
  %v434 = vxor.u32 %v428, 2147483648
  %v435 = vsel %vm433, %v427, %v434
  %vm436 = vcmp.eq.s32.totalorder %v431, 2
  %v437 = vxor.u32 %v427, 2147483648
  %v438 = vsel %vm436, %v437, %v428
  %v439 = vsel %vm432, %v435, %v438
  %v440 = vsel %vm429, nan, %v439
  %v441 = vand.u32 2147483647, %v304
  %vm442 = vcmp.le.f32.partialorder %v441, 0.7853982
  %vm443 = vcmp.lt.s32.totalorder %v304, 0
  %v444 = vand.u32 %v304, 2139095040
  %v445 = vshrl.u32 %v444, 23
  %v446 = vsub.s32 %v445, 127
  %v447 = vand.u32 2147483647, %v304
  %v448 = vand.u32 %v447, 8388607
  %v449 = vor.u32 %v448, 8388608
  %v450 = vsub.s32 0, %v449
  %v451 = vadd.s32 %v446, 1
  %vm452 = vcmp.gt.s32.totalorder %v451, 0
  %v453 = vsel %vm452, %v451, 0
  %v454 = vshrl.u32 %v453, 5
  %v455 = vand.u32 %v453, 31
  %v456 = vsub.s32 32, %v455
  %v457 = vshrl.u32 683565275, %v456
  %v458 = vshll.u32 683565275, %v455
  %v459 = vshrl.u32 2475754826, %v456
  %v460 = vor.u32 %v458, %v459
  %v461 = vshll.u32 2475754826, %v455
  %v462 = vshrl.u32 2131351028, %v456
  %v463 = vor.u32 %v461, %v462
  %v464 = vshll.u32 2131351028, %v455
  %v465 = vshrl.u32 2102212464, %v456
  %v466 = vor.u32 %v464, %v465
  %v467 = vshll.u32 2102212464, %v455
  %v468 = vshrl.u32 920167782, %v456
  %v469 = vor.u32 %v467, %v468
  %v470 = vshll.u32 920167782, %v455
  %v471 = vshrl.u32 1326507024, %v456
  %v472 = vor.u32 %v470, %v471
  %vm473 = vcmp.lt.s32.totalorder %v454, 1
  %vm474 = vcmp.lt.s32.totalorder %v454, 2
  %vm475 = vcmp.lt.s32.totalorder %v454, 3
  %vm476 = vcmp.lt.s32.totalorder %v454, 4
  %v477 = vsel %vm473, %v457, %v460
  %v478 = vsel %vm476, %v466, 2102212464
  %v479 = vsel %vm475, %v463, %v478
  %v480 = vsel %vm474, %v477, %v479
  %v481 = vsel %vm473, %v460, %v463
  %v482 = vsel %vm476, %v469, 920167782
  %v483 = vsel %vm475, %v466, %v482
  %v484 = vsel %vm474, %v481, %v483
  %v485 = vsel %vm473, %v463, %v466
  %v486 = vsel %vm476, %v472, 1326507024
  %v487 = vsel %vm475, %v469, %v486
  %v488 = vsel %vm474, %v485, %v487
  %v489 = vshll.u32 %v449, 8
  %v490 = vmul.u32.u64.compose %v489, %v488
  %v491 = vextract.low.u32 %v490
  %v492 = vextract.high.u32 %v490
  %v493 = vmul.u32.u64.compose %v489, %v484
  %v494 = vextract.low.u32 %v493
  %v495 = vextract.high.u32 %v493
  %v496 = vmul.u32 %v489, %v480
  %v497 = vadd.s32 %v492, %v494
  %vm498 = vc.u32 %v492, %v494
  %v499 = vadd.s32 %v495, 1
  %v500 = vsel %vm498, %v499, %v495
  %v501 = vadd.s32 %v496, %v500
  %v502 = vadd.s32 %v501, 536870912
  %v503 = vshrl.u32 %v502, 30
  %v504 = vshll.u32 %v503, 30
  %v505 = vsub.s32 %v501, %v504
  %vm506 = vcmp.lt.s32.totalorder %v505, 0
  %v507 = vsub.s32 0, %v505
  %v508 = vsel %vm506, %v507, %v505
  %v509 = vclz %v508
  %v510 = vsub.s32 %v509, 2
  %vm511 = vcmp.gt.s32.totalorder 0, %v510
  %v512 = vsel %vm511, 0, %v510
  %v513 = vsub.s32 32, %v512
  %v514 = vshll.u32 %v505, %v512
  %v515 = vshrl.u32 %v497, %v513
  %v516 = vor.u32 %v514, %v515
  %v517 = vsub.s32 4294967266, %v512
  %v518 = vadd.s32 %v517, 127
  %v519 = vshll.u32 %v518, 23
  %v520 = vor.u32 4788187, %v519
  %v521 = vand.u32 2147483647, %v520
  %v523 = vcvt.s32.f32 %v516
  %v524 = vmul.f32 %v523, %v521
  %v525 = vxor.u32 %v524, 2147483648
  %v526 = vsel %vm443, %v525, %v524
  %v527 = vsub.s32 4, %v503
  %v528 = vsel %vm443, %v527, %v503
  %v529 = vsel %vm442, %v304, %v526
  %v530 = vsel %vm442, 0, %v528
  %v531 = vcosq.f32.pop %v529
  %v532 = vsinq.f32.pop %v529
  %vm533 = vweird.f32 %v304
  %v534 = vadd.s32 %v530, 3
  %v535 = vand.u32 %v534, 3
  %vm536 = vcmp.lt.s32.totalorder %v535, 2
  %vm537 = vcmp.eq.s32.totalorder %v535, 0
  %v538 = vxor.u32 %v532, 2147483648
  %v539 = vsel %vm537, %v531, %v538
  %vm540 = vcmp.eq.s32.totalorder %v535, 2
  %v541 = vxor.u32 %v531, 2147483648
  %v542 = vsel %vm540, %v541, %v532
  %v543 = vsel %vm536, %v539, %v542
  %v544 = vsel %vm533, nan, %v543
  %v545 = vand.u32 2147483647, %v309
  %vm546 = vcmp.le.f32.partialorder %v545, 0.7853982
  %vm547 = vcmp.lt.s32.totalorder %v309, 0
  %v548 = vand.u32 %v309, 2139095040
  %v549 = vshrl.u32 %v548, 23
  %v550 = vsub.s32 %v549, 127
  %v551 = vand.u32 2147483647, %v309
  %v552 = vand.u32 %v551, 8388607
  %v553 = vor.u32 %v552, 8388608
  %v554 = vsub.s32 0, %v553
  %v555 = vadd.s32 %v550, 1
  %vm556 = vcmp.gt.s32.totalorder %v555, 0
  %v557 = vsel %vm556, %v555, 0
  %v558 = vshrl.u32 %v557, 5
  %v559 = vand.u32 %v557, 31
  %v560 = vsub.s32 32, %v559
  %v561 = vshrl.u32 683565275, %v560
  %v562 = vshll.u32 683565275, %v559
  %v563 = vshrl.u32 2475754826, %v560
  %v564 = vor.u32 %v562, %v563
  %v565 = vshll.u32 2475754826, %v559
  %v566 = vshrl.u32 2131351028, %v560
  %v567 = vor.u32 %v565, %v566
  %v568 = vshll.u32 2131351028, %v559
  %v569 = vshrl.u32 2102212464, %v560
  %v570 = vor.u32 %v568, %v569
  %v571 = vshll.u32 2102212464, %v559
  %v572 = vshrl.u32 920167782, %v560
  %v573 = vor.u32 %v571, %v572
  %v574 = vshll.u32 920167782, %v559
  %v575 = vshrl.u32 1326507024, %v560
  %v576 = vor.u32 %v574, %v575
  %vm577 = vcmp.lt.s32.totalorder %v558, 1
  %vm578 = vcmp.lt.s32.totalorder %v558, 2
  %vm579 = vcmp.lt.s32.totalorder %v558, 3
  %vm580 = vcmp.lt.s32.totalorder %v558, 4
  %v581 = vsel %vm577, %v561, %v564
  %v582 = vsel %vm580, %v570, 2102212464
  %v583 = vsel %vm579, %v567, %v582
  %v584 = vsel %vm578, %v581, %v583
  %v585 = vsel %vm577, %v564, %v567
  %v586 = vsel %vm580, %v573, 920167782
  %v587 = vsel %vm579, %v570, %v586
  %v588 = vsel %vm578, %v585, %v587
  %v589 = vsel %vm577, %v567, %v570
  %v590 = vsel %vm580, %v576, 1326507024
  %v591 = vsel %vm579, %v573, %v590
  %v592 = vsel %vm578, %v589, %v591
  %v593 = vshll.u32 %v553, 8
  %v594 = vmul.u32.u64.compose %v593, %v592
  %v595 = vextract.low.u32 %v594
  %v596 = vextract.high.u32 %v594
  %v597 = vmul.u32.u64.compose %v593, %v588
  %v598 = vextract.low.u32 %v597
  %v599 = vextract.high.u32 %v597
  %v600 = vmul.u32 %v593, %v584
  %v601 = vadd.s32 %v596, %v598
  %vm602 = vc.u32 %v596, %v598
  %v603 = vadd.s32 %v599, 1
  %v604 = vsel %vm602, %v603, %v599
  %v605 = vadd.s32 %v600, %v604
  %v606 = vadd.s32 %v605, 536870912
  %v607 = vshrl.u32 %v606, 30
  %v608 = vshll.u32 %v607, 30
  %v609 = vsub.s32 %v605, %v608
  %vm610 = vcmp.lt.s32.totalorder %v609, 0
  %v611 = vsub.s32 0, %v609
  %v612 = vsel %vm610, %v611, %v609
  %v613 = vclz %v612
  %v614 = vsub.s32 %v613, 2
  %vm615 = vcmp.gt.s32.totalorder 0, %v614
  %v616 = vsel %vm615, 0, %v614
  %v617 = vsub.s32 32, %v616
  %v618 = vshll.u32 %v609, %v616
  %v619 = vshrl.u32 %v601, %v617
  %v620 = vor.u32 %v618, %v619
  %v621 = vsub.s32 4294967266, %v616
  %v622 = vadd.s32 %v621, 127
  %v623 = vshll.u32 %v622, 23
  %v624 = vor.u32 4788187, %v623
  %v625 = vand.u32 2147483647, %v624
  %v627 = vcvt.s32.f32 %v620
  %v628 = vmul.f32 %v627, %v625
  %v629 = vxor.u32 %v628, 2147483648
  %v630 = vsel %vm547, %v629, %v628
  %v631 = vsub.s32 4, %v607
  %v632 = vsel %vm547, %v631, %v607
  %v633 = vsel %vm546, %v309, %v630
  %v634 = vsel %vm546, 0, %v632
  %v635 = vcosq.f32.pop %v633
  %v636 = vsinq.f32.pop %v633
  %vm637 = vweird.f32 %v309
  %v638 = vadd.s32 %v634, 3
  %v639 = vand.u32 %v638, 3
  %vm640 = vcmp.lt.s32.totalorder %v639, 2
  %vm641 = vcmp.eq.s32.totalorder %v639, 0
  %v642 = vxor.u32 %v636, 2147483648
  %v643 = vsel %vm641, %v635, %v642
  %vm644 = vcmp.eq.s32.totalorder %v639, 2
  %v645 = vxor.u32 %v635, 2147483648
  %v646 = vsel %vm644, %v645, %v636
  %v647 = vsel %vm640, %v643, %v646
  %v648 = vsel %vm637, nan, %v647
  %v649 = vand.u32 2147483647, %v314
  %vm650 = vcmp.le.f32.partialorder %v649, 0.7853982
  %vm651 = vcmp.lt.s32.totalorder %v314, 0
  %v652 = vand.u32 %v314, 2139095040
  %v653 = vshrl.u32 %v652, 23
  %v654 = vsub.s32 %v653, 127
  %v655 = vand.u32 2147483647, %v314
  %v656 = vand.u32 %v655, 8388607
  %v657 = vor.u32 %v656, 8388608
  %v658 = vsub.s32 0, %v657
  %v659 = vadd.s32 %v654, 1
  %vm660 = vcmp.gt.s32.totalorder %v659, 0
  %v661 = vsel %vm660, %v659, 0
  %v662 = vshrl.u32 %v661, 5
  %v663 = vand.u32 %v661, 31
  %v664 = vsub.s32 32, %v663
  %v665 = vshrl.u32 683565275, %v664
  %v666 = vshll.u32 683565275, %v663
  %v667 = vshrl.u32 2475754826, %v664
  %v668 = vor.u32 %v666, %v667
  %v669 = vshll.u32 2475754826, %v663
  %v670 = vshrl.u32 2131351028, %v664
  %v671 = vor.u32 %v669, %v670
  %v672 = vshll.u32 2131351028, %v663
  %v673 = vshrl.u32 2102212464, %v664
  %v674 = vor.u32 %v672, %v673
  %v675 = vshll.u32 2102212464, %v663
  %v676 = vshrl.u32 920167782, %v664
  %v677 = vor.u32 %v675, %v676
  %v678 = vshll.u32 920167782, %v663
  %v679 = vshrl.u32 1326507024, %v664
  %v680 = vor.u32 %v678, %v679
  %vm681 = vcmp.lt.s32.totalorder %v662, 1
  %vm682 = vcmp.lt.s32.totalorder %v662, 2
  %vm683 = vcmp.lt.s32.totalorder %v662, 3
  %vm684 = vcmp.lt.s32.totalorder %v662, 4
  %v685 = vsel %vm681, %v665, %v668
  %v686 = vsel %vm684, %v674, 2102212464
  %v687 = vsel %vm683, %v671, %v686
  %v688 = vsel %vm682, %v685, %v687
  %v689 = vsel %vm681, %v668, %v671
  %v690 = vsel %vm684, %v677, 920167782
  %v691 = vsel %vm683, %v674, %v690
  %v692 = vsel %vm682, %v689, %v691
  %v693 = vsel %vm681, %v671, %v674
  %v694 = vsel %vm684, %v680, 1326507024
  %v695 = vsel %vm683, %v677, %v694
  %v696 = vsel %vm682, %v693, %v695
  %v697 = vshll.u32 %v657, 8
  %v698 = vmul.u32.u64.compose %v697, %v696
  %v699 = vextract.low.u32 %v698
  %v700 = vextract.high.u32 %v698
  %v701 = vmul.u32.u64.compose %v697, %v692
  %v702 = vextract.low.u32 %v701
  %v703 = vextract.high.u32 %v701
  %v704 = vmul.u32 %v697, %v688
  %v705 = vadd.s32 %v700, %v702
  %vm706 = vc.u32 %v700, %v702
  %v707 = vadd.s32 %v703, 1
  %v708 = vsel %vm706, %v707, %v703
  %v709 = vadd.s32 %v704, %v708
  %v710 = vadd.s32 %v709, 536870912
  %v711 = vshrl.u32 %v710, 30
  %v712 = vshll.u32 %v711, 30
  %v713 = vsub.s32 %v709, %v712
  %vm714 = vcmp.lt.s32.totalorder %v713, 0
  %v715 = vsub.s32 0, %v713
  %v716 = vsel %vm714, %v715, %v713
  %v717 = vclz %v716
  %v718 = vsub.s32 %v717, 2
  %vm719 = vcmp.gt.s32.totalorder 0, %v718
  %v720 = vsel %vm719, 0, %v718
  %v721 = vsub.s32 32, %v720
  %v722 = vshll.u32 %v713, %v720
  %v723 = vshrl.u32 %v705, %v721
  %v724 = vor.u32 %v722, %v723
  %v725 = vsub.s32 4294967266, %v720
  %v726 = vadd.s32 %v725, 127
  %v727 = vshll.u32 %v726, 23
  %v728 = vor.u32 4788187, %v727
  %v729 = vand.u32 2147483647, %v728
  %v731 = vcvt.s32.f32 %v724
  %v732 = vmul.f32 %v731, %v729
  %v733 = vxor.u32 %v732, 2147483648
  %v734 = vsel %vm651, %v733, %v732
  %v735 = vsub.s32 4, %v711
  %v736 = vsel %vm651, %v735, %v711
  %v737 = vsel %vm650, %v314, %v734
  %v738 = vsel %vm650, 0, %v736
  %v739 = vcosq.f32.pop %v737
  %v740 = vsinq.f32.pop %v737
  %vm741 = vweird.f32 %v314
  %v742 = vadd.s32 %v738, 3
  %v743 = vand.u32 %v742, 3
  %vm744 = vcmp.lt.s32.totalorder %v743, 2
  %vm745 = vcmp.eq.s32.totalorder %v743, 0
  %v746 = vxor.u32 %v740, 2147483648
  %v747 = vsel %vm745, %v739, %v746
  %vm748 = vcmp.eq.s32.totalorder %v743, 2
  %v749 = vxor.u32 %v739, 2147483648
  %v750 = vsel %vm748, %v749, %v740
  %v751 = vsel %vm744, %v747, %v750
  %v752 = vsel %vm741, nan, %v751
  %v753 = vand.u32 2147483647, %v319
  %vm754 = vcmp.le.f32.partialorder %v753, 0.7853982
  %vm755 = vcmp.lt.s32.totalorder %v319, 0
  %v756 = vand.u32 %v319, 2139095040
  %v757 = vshrl.u32 %v756, 23
  %v758 = vsub.s32 %v757, 127
  %v759 = vand.u32 2147483647, %v319
  %v760 = vand.u32 %v759, 8388607
  %v761 = vor.u32 %v760, 8388608
  %v762 = vsub.s32 0, %v761
  %v763 = vadd.s32 %v758, 1
  %vm764 = vcmp.gt.s32.totalorder %v763, 0
  %v765 = vsel %vm764, %v763, 0
  %v766 = vshrl.u32 %v765, 5
  %v767 = vand.u32 %v765, 31
  %v768 = vsub.s32 32, %v767
  %v769 = vshrl.u32 683565275, %v768
  %v770 = vshll.u32 683565275, %v767
  %v771 = vshrl.u32 2475754826, %v768
  %v772 = vor.u32 %v770, %v771
  %v773 = vshll.u32 2475754826, %v767
  %v774 = vshrl.u32 2131351028, %v768
  %v775 = vor.u32 %v773, %v774
  %v776 = vshll.u32 2131351028, %v767
  %v777 = vshrl.u32 2102212464, %v768
  %v778 = vor.u32 %v776, %v777
  %v779 = vshll.u32 2102212464, %v767
  %v780 = vshrl.u32 920167782, %v768
  %v781 = vor.u32 %v779, %v780
  %v782 = vshll.u32 920167782, %v767
  %v783 = vshrl.u32 1326507024, %v768
  %v784 = vor.u32 %v782, %v783
  %vm785 = vcmp.lt.s32.totalorder %v766, 1
  %vm786 = vcmp.lt.s32.totalorder %v766, 2
  %vm787 = vcmp.lt.s32.totalorder %v766, 3
  %vm788 = vcmp.lt.s32.totalorder %v766, 4
  %v789 = vsel %vm785, %v769, %v772
  %v790 = vsel %vm788, %v778, 2102212464
  %v791 = vsel %vm787, %v775, %v790
  %v792 = vsel %vm786, %v789, %v791
  %v793 = vsel %vm785, %v772, %v775
  %v794 = vsel %vm788, %v781, 920167782
  %v795 = vsel %vm787, %v778, %v794
  %v796 = vsel %vm786, %v793, %v795
  %v797 = vsel %vm785, %v775, %v778
  %v798 = vsel %vm788, %v784, 1326507024
  %v799 = vsel %vm787, %v781, %v798
  %v800 = vsel %vm786, %v797, %v799
  %v801 = vshll.u32 %v761, 8
  %v802 = vmul.u32.u64.compose %v801, %v800
  %v803 = vextract.low.u32 %v802
  %v804 = vextract.high.u32 %v802
  %v805 = vmul.u32.u64.compose %v801, %v796
  %v806 = vextract.low.u32 %v805
  %v807 = vextract.high.u32 %v805
  %v808 = vmul.u32 %v801, %v792
  %v809 = vadd.s32 %v804, %v806
  %vm810 = vc.u32 %v804, %v806
  %v811 = vadd.s32 %v807, 1
  %v812 = vsel %vm810, %v811, %v807
  %v813 = vadd.s32 %v808, %v812
  %v814 = vadd.s32 %v813, 536870912
  %v815 = vshrl.u32 %v814, 30
  %v816 = vshll.u32 %v815, 30
  %v817 = vsub.s32 %v813, %v816
  %vm818 = vcmp.lt.s32.totalorder %v817, 0
  %v819 = vsub.s32 0, %v817
  %v820 = vsel %vm818, %v819, %v817
  %v821 = vclz %v820
  %v822 = vsub.s32 %v821, 2
  %vm823 = vcmp.gt.s32.totalorder 0, %v822
  %v824 = vsel %vm823, 0, %v822
  %v825 = vsub.s32 32, %v824
  %v826 = vshll.u32 %v817, %v824
  %v827 = vshrl.u32 %v809, %v825
  %v828 = vor.u32 %v826, %v827
  %v829 = vsub.s32 4294967266, %v824
  %v830 = vadd.s32 %v829, 127
  %v831 = vshll.u32 %v830, 23
  %v832 = vor.u32 4788187, %v831
  %v833 = vand.u32 2147483647, %v832
  %v835 = vcvt.s32.f32 %v828
  %v836 = vmul.f32 %v835, %v833
  %v837 = vxor.u32 %v836, 2147483648
  %v838 = vsel %vm755, %v837, %v836
  %v839 = vsub.s32 4, %v815
  %v840 = vsel %vm755, %v839, %v815
  %v841 = vsel %vm754, %v319, %v838
  %v842 = vsel %vm754, 0, %v840
  %v843 = vcosq.f32.pop %v841
  %v844 = vsinq.f32.pop %v841
  %vm845 = vweird.f32 %v319
  %v846 = vadd.s32 %v842, 3
  %v847 = vand.u32 %v846, 3
  %vm848 = vcmp.lt.s32.totalorder %v847, 2
  %vm849 = vcmp.eq.s32.totalorder %v847, 0
  %v850 = vxor.u32 %v844, 2147483648
  %v851 = vsel %vm849, %v843, %v850
  %vm852 = vcmp.eq.s32.totalorder %v847, 2
  %v853 = vxor.u32 %v843, 2147483648
  %v854 = vsel %vm852, %v853, %v844
  %v855 = vsel %vm848, %v851, %v854
  %v856 = vsel %vm845, nan, %v855
  %v857 = vand.u32 2147483647, %v324
  %vm858 = vcmp.le.f32.partialorder %v857, 0.7853982
  %vm859 = vcmp.lt.s32.totalorder %v324, 0
  %v860 = vand.u32 %v324, 2139095040
  %v861 = vshrl.u32 %v860, 23
  %v862 = vsub.s32 %v861, 127
  %v863 = vand.u32 2147483647, %v324
  %v864 = vand.u32 %v863, 8388607
  %v865 = vor.u32 %v864, 8388608
  %v866 = vsub.s32 0, %v865
  %v867 = vadd.s32 %v862, 1
  %vm868 = vcmp.gt.s32.totalorder %v867, 0
  %v869 = vsel %vm868, %v867, 0
  %v870 = vshrl.u32 %v869, 5
  %v871 = vand.u32 %v869, 31
  %v872 = vsub.s32 32, %v871
  %v873 = vshrl.u32 683565275, %v872
  %v874 = vshll.u32 683565275, %v871
  %v875 = vshrl.u32 2475754826, %v872
  %v876 = vor.u32 %v874, %v875
  %v877 = vshll.u32 2475754826, %v871
  %v878 = vshrl.u32 2131351028, %v872
  %v879 = vor.u32 %v877, %v878
  %v880 = vshll.u32 2131351028, %v871
  %v881 = vshrl.u32 2102212464, %v872
  %v882 = vor.u32 %v880, %v881
  %v883 = vshll.u32 2102212464, %v871
  %v884 = vshrl.u32 920167782, %v872
  %v885 = vor.u32 %v883, %v884
  %v886 = vshll.u32 920167782, %v871
  %v887 = vshrl.u32 1326507024, %v872
  %v888 = vor.u32 %v886, %v887
  %vm889 = vcmp.lt.s32.totalorder %v870, 1
  %vm890 = vcmp.lt.s32.totalorder %v870, 2
  %vm891 = vcmp.lt.s32.totalorder %v870, 3
  %vm892 = vcmp.lt.s32.totalorder %v870, 4
  %v893 = vsel %vm889, %v873, %v876
  %v894 = vsel %vm892, %v882, 2102212464
  %v895 = vsel %vm891, %v879, %v894
  %v896 = vsel %vm890, %v893, %v895
  %v897 = vsel %vm889, %v876, %v879
  %v898 = vsel %vm892, %v885, 920167782
  %v899 = vsel %vm891, %v882, %v898
  %v900 = vsel %vm890, %v897, %v899
  %v901 = vsel %vm889, %v879, %v882
  %v902 = vsel %vm892, %v888, 1326507024
  %v903 = vsel %vm891, %v885, %v902
  %v904 = vsel %vm890, %v901, %v903
  %v905 = vshll.u32 %v865, 8
  %v906 = vmul.u32.u64.compose %v905, %v904
  %v907 = vextract.low.u32 %v906
  %v908 = vextract.high.u32 %v906
  %v909 = vmul.u32.u64.compose %v905, %v900
  %v910 = vextract.low.u32 %v909
  %v911 = vextract.high.u32 %v909
  %v912 = vmul.u32 %v905, %v896
  %v913 = vadd.s32 %v908, %v910
  %vm914 = vc.u32 %v908, %v910
  %v915 = vadd.s32 %v911, 1
  %v916 = vsel %vm914, %v915, %v911
  %v917 = vadd.s32 %v912, %v916
  %v918 = vadd.s32 %v917, 536870912
  %v919 = vshrl.u32 %v918, 30
  %v920 = vshll.u32 %v919, 30
  %v921 = vsub.s32 %v917, %v920
  %vm922 = vcmp.lt.s32.totalorder %v921, 0
  %v923 = vsub.s32 0, %v921
  %v924 = vsel %vm922, %v923, %v921
  %v925 = vclz %v924
  %v926 = vsub.s32 %v925, 2
  %vm927 = vcmp.gt.s32.totalorder 0, %v926
  %v928 = vsel %vm927, 0, %v926
  %v929 = vsub.s32 32, %v928
  %v930 = vshll.u32 %v921, %v928
  %v931 = vshrl.u32 %v913, %v929
  %v932 = vor.u32 %v930, %v931
  %v933 = vsub.s32 4294967266, %v928
  %v934 = vadd.s32 %v933, 127
  %v935 = vshll.u32 %v934, 23
  %v936 = vor.u32 4788187, %v935
  %v937 = vand.u32 2147483647, %v936
  %v939 = vcvt.s32.f32 %v932
  %v940 = vmul.f32 %v939, %v937
  %v941 = vxor.u32 %v940, 2147483648
  %v942 = vsel %vm859, %v941, %v940
  %v943 = vsub.s32 4, %v919
  %v944 = vsel %vm859, %v943, %v919
  %v945 = vsel %vm858, %v324, %v942
  %v946 = vsel %vm858, 0, %v944
  %v947 = vcosq.f32.pop %v945
  %v948 = vsinq.f32.pop %v945
  %vm949 = vweird.f32 %v324
  %v950 = vadd.s32 %v946, 3
  %v951 = vand.u32 %v950, 3
  %vm952 = vcmp.lt.s32.totalorder %v951, 2
  %vm953 = vcmp.eq.s32.totalorder %v951, 0
  %v954 = vxor.u32 %v948, 2147483648
  %v955 = vsel %vm953, %v947, %v954
  %vm956 = vcmp.eq.s32.totalorder %v951, 2
  %v957 = vxor.u32 %v947, 2147483648
  %v958 = vsel %vm956, %v957, %v948
  %v959 = vsel %vm952, %v955, %v958
  %v960 = vsel %vm949, nan, %v959
  %v961 = vand.u32 2147483647, %v329
  %vm962 = vcmp.le.f32.partialorder %v961, 0.7853982
  %vm963 = vcmp.lt.s32.totalorder %v329, 0
  %v964 = vand.u32 %v329, 2139095040
  %v965 = vshrl.u32 %v964, 23
  %v966 = vsub.s32 %v965, 127
  %v967 = vand.u32 2147483647, %v329
  %v968 = vand.u32 %v967, 8388607
  %v969 = vor.u32 %v968, 8388608
  %v970 = vsub.s32 0, %v969
  %v971 = vadd.s32 %v966, 1
  %vm972 = vcmp.gt.s32.totalorder %v971, 0
  %v973 = vsel %vm972, %v971, 0
  %v974 = vshrl.u32 %v973, 5
  %v975 = vand.u32 %v973, 31
  %v976 = vsub.s32 32, %v975
  %v977 = vshrl.u32 683565275, %v976
  %v978 = vshll.u32 683565275, %v975
  %v979 = vshrl.u32 2475754826, %v976
  %v980 = vor.u32 %v978, %v979
  %v981 = vshll.u32 2475754826, %v975
  %v982 = vshrl.u32 2131351028, %v976
  %v983 = vor.u32 %v981, %v982
  %v984 = vshll.u32 2131351028, %v975
  %v985 = vshrl.u32 2102212464, %v976
  %v986 = vor.u32 %v984, %v985
  %v987 = vshll.u32 2102212464, %v975
  %v988 = vshrl.u32 920167782, %v976
  %v989 = vor.u32 %v987, %v988
  %v990 = vshll.u32 920167782, %v975
  %v991 = vshrl.u32 1326507024, %v976
  %v992 = vor.u32 %v990, %v991
  %vm993 = vcmp.lt.s32.totalorder %v974, 1
  %vm994 = vcmp.lt.s32.totalorder %v974, 2
  %vm995 = vcmp.lt.s32.totalorder %v974, 3
  %vm996 = vcmp.lt.s32.totalorder %v974, 4
  %v997 = vsel %vm993, %v977, %v980
  %v998 = vsel %vm996, %v986, 2102212464
  %v999 = vsel %vm995, %v983, %v998
  %v1000 = vsel %vm994, %v997, %v999
  %v1001 = vsel %vm993, %v980, %v983
  %v1002 = vsel %vm996, %v989, 920167782
  %v1003 = vsel %vm995, %v986, %v1002
  %v1004 = vsel %vm994, %v1001, %v1003
  %v1005 = vsel %vm993, %v983, %v986
  %v1006 = vsel %vm996, %v992, 1326507024
  %v1007 = vsel %vm995, %v989, %v1006
  %v1008 = vsel %vm994, %v1005, %v1007
  %v1009 = vshll.u32 %v969, 8
  %v1010 = vmul.u32.u64.compose %v1009, %v1008
  %v1011 = vextract.low.u32 %v1010
  %v1012 = vextract.high.u32 %v1010
  %v1013 = vmul.u32.u64.compose %v1009, %v1004
  %v1014 = vextract.low.u32 %v1013
  %v1015 = vextract.high.u32 %v1013
  %v1016 = vmul.u32 %v1009, %v1000
  %v1017 = vadd.s32 %v1012, %v1014
  %vm1018 = vc.u32 %v1012, %v1014
  %v1019 = vadd.s32 %v1015, 1
  %v1020 = vsel %vm1018, %v1019, %v1015
  %v1021 = vadd.s32 %v1016, %v1020
  %v1022 = vadd.s32 %v1021, 536870912
  %v1023 = vshrl.u32 %v1022, 30
  %v1024 = vshll.u32 %v1023, 30
  %v1025 = vsub.s32 %v1021, %v1024
  %vm1026 = vcmp.lt.s32.totalorder %v1025, 0
  %v1027 = vsub.s32 0, %v1025
  %v1028 = vsel %vm1026, %v1027, %v1025
  %v1029 = vclz %v1028
  %v1030 = vsub.s32 %v1029, 2
  %vm1031 = vcmp.gt.s32.totalorder 0, %v1030
  %v1032 = vsel %vm1031, 0, %v1030
  %v1033 = vsub.s32 32, %v1032
  %v1034 = vshll.u32 %v1025, %v1032
  %v1035 = vshrl.u32 %v1017, %v1033
  %v1036 = vor.u32 %v1034, %v1035
  %v1037 = vsub.s32 4294967266, %v1032
  %v1038 = vadd.s32 %v1037, 127
  %v1039 = vshll.u32 %v1038, 23
  %v1040 = vor.u32 4788187, %v1039
  %v1041 = vand.u32 2147483647, %v1040
  %v1043 = vcvt.s32.f32 %v1036
  %v1044 = vmul.f32 %v1043, %v1041
  %v1045 = vxor.u32 %v1044, 2147483648
  %v1046 = vsel %vm963, %v1045, %v1044
  %v1047 = vsub.s32 4, %v1023
  %v1048 = vsel %vm963, %v1047, %v1023
  %v1049 = vsel %vm962, %v329, %v1046
  %v1050 = vsel %vm962, 0, %v1048
  %v1051 = vcosq.f32.pop %v1049
  %v1052 = vsinq.f32.pop %v1049
  %vm1053 = vweird.f32 %v329
  %v1054 = vadd.s32 %v1050, 3
  %v1055 = vand.u32 %v1054, 3
  %vm1056 = vcmp.lt.s32.totalorder %v1055, 2
  %vm1057 = vcmp.eq.s32.totalorder %v1055, 0
  %v1058 = vxor.u32 %v1052, 2147483648
  %v1059 = vsel %vm1057, %v1051, %v1058
  %vm1060 = vcmp.eq.s32.totalorder %v1055, 2
  %v1061 = vxor.u32 %v1051, 2147483648
  %v1062 = vsel %vm1060, %v1061, %v1052
  %v1063 = vsel %vm1056, %v1059, %v1062
  %v1064 = vsel %vm1053, nan, %v1063
  %v1065 = vand.u32 2147483647, %v334
  %vm1066 = vcmp.le.f32.partialorder %v1065, 0.7853982
  %vm1067 = vcmp.lt.s32.totalorder %v334, 0
  %v1068 = vand.u32 %v334, 2139095040
  %v1069 = vshrl.u32 %v1068, 23
  %v1070 = vsub.s32 %v1069, 127
  %v1071 = vand.u32 2147483647, %v334
  %v1072 = vand.u32 %v1071, 8388607
  %v1073 = vor.u32 %v1072, 8388608
  %v1074 = vsub.s32 0, %v1073
  %v1075 = vadd.s32 %v1070, 1
  %vm1076 = vcmp.gt.s32.totalorder %v1075, 0
  %v1077 = vsel %vm1076, %v1075, 0
  %v1078 = vshrl.u32 %v1077, 5
  %v1079 = vand.u32 %v1077, 31
  %v1080 = vsub.s32 32, %v1079
  %v1081 = vshrl.u32 683565275, %v1080
  %v1082 = vshll.u32 683565275, %v1079
  %v1083 = vshrl.u32 2475754826, %v1080
  %v1084 = vor.u32 %v1082, %v1083
  %v1085 = vshll.u32 2475754826, %v1079
  %v1086 = vshrl.u32 2131351028, %v1080
  %v1087 = vor.u32 %v1085, %v1086
  %v1088 = vshll.u32 2131351028, %v1079
  %v1089 = vshrl.u32 2102212464, %v1080
  %v1090 = vor.u32 %v1088, %v1089
  %v1091 = vshll.u32 2102212464, %v1079
  %v1092 = vshrl.u32 920167782, %v1080
  %v1093 = vor.u32 %v1091, %v1092
  %v1094 = vshll.u32 920167782, %v1079
  %v1095 = vshrl.u32 1326507024, %v1080
  %v1096 = vor.u32 %v1094, %v1095
  %vm1097 = vcmp.lt.s32.totalorder %v1078, 1
  %vm1098 = vcmp.lt.s32.totalorder %v1078, 2
  %vm1099 = vcmp.lt.s32.totalorder %v1078, 3
  %vm1100 = vcmp.lt.s32.totalorder %v1078, 4
  %v1101 = vsel %vm1097, %v1081, %v1084
  %v1102 = vsel %vm1100, %v1090, 2102212464
  %v1103 = vsel %vm1099, %v1087, %v1102
  %v1104 = vsel %vm1098, %v1101, %v1103
  %v1105 = vsel %vm1097, %v1084, %v1087
  %v1106 = vsel %vm1100, %v1093, 920167782
  %v1107 = vsel %vm1099, %v1090, %v1106
  %v1108 = vsel %vm1098, %v1105, %v1107
  %v1109 = vsel %vm1097, %v1087, %v1090
  %v1110 = vsel %vm1100, %v1096, 1326507024
  %v1111 = vsel %vm1099, %v1093, %v1110
  %v1112 = vsel %vm1098, %v1109, %v1111
  %v1113 = vshll.u32 %v1073, 8
  %v1114 = vmul.u32.u64.compose %v1113, %v1112
  %v1115 = vextract.low.u32 %v1114
  %v1116 = vextract.high.u32 %v1114
  %v1117 = vmul.u32.u64.compose %v1113, %v1108
  %v1118 = vextract.low.u32 %v1117
  %v1119 = vextract.high.u32 %v1117
  %v1120 = vmul.u32 %v1113, %v1104
  %v1121 = vadd.s32 %v1116, %v1118
  %vm1122 = vc.u32 %v1116, %v1118
  %v1123 = vadd.s32 %v1119, 1
  %v1124 = vsel %vm1122, %v1123, %v1119
  %v1125 = vadd.s32 %v1120, %v1124
  %v1126 = vadd.s32 %v1125, 536870912
  %v1127 = vshrl.u32 %v1126, 30
  %v1128 = vshll.u32 %v1127, 30
  %v1129 = vsub.s32 %v1125, %v1128
  %vm1130 = vcmp.lt.s32.totalorder %v1129, 0
  %v1131 = vsub.s32 0, %v1129
  %v1132 = vsel %vm1130, %v1131, %v1129
  %v1133 = vclz %v1132
  %v1134 = vsub.s32 %v1133, 2
  %vm1135 = vcmp.gt.s32.totalorder 0, %v1134
  %v1136 = vsel %vm1135, 0, %v1134
  %v1137 = vsub.s32 32, %v1136
  %v1138 = vshll.u32 %v1129, %v1136
  %v1139 = vshrl.u32 %v1121, %v1137
  %v1140 = vor.u32 %v1138, %v1139
  %v1141 = vsub.s32 4294967266, %v1136
  %v1142 = vadd.s32 %v1141, 127
  %v1143 = vshll.u32 %v1142, 23
  %v1144 = vor.u32 4788187, %v1143
  %v1145 = vand.u32 2147483647, %v1144
  %v1147 = vcvt.s32.f32 %v1140
  %v1148 = vmul.f32 %v1147, %v1145
  %v1149 = vxor.u32 %v1148, 2147483648
  %v1150 = vsel %vm1067, %v1149, %v1148
  %v1151 = vsub.s32 4, %v1127
  %v1152 = vsel %vm1067, %v1151, %v1127
  %v1153 = vsel %vm1066, %v334, %v1150
  %v1154 = vsel %vm1066, 0, %v1152
  %v1155 = vcosq.f32.pop %v1153
  %v1156 = vsinq.f32.pop %v1153
  %vm1157 = vweird.f32 %v334
  %v1158 = vadd.s32 %v1154, 3
  %v1159 = vand.u32 %v1158, 3
  %vm1160 = vcmp.lt.s32.totalorder %v1159, 2
  %vm1161 = vcmp.eq.s32.totalorder %v1159, 0
  %v1162 = vxor.u32 %v1156, 2147483648
  %v1163 = vsel %vm1161, %v1155, %v1162
  %vm1164 = vcmp.eq.s32.totalorder %v1159, 2
  %v1165 = vxor.u32 %v1155, 2147483648
  %v1166 = vsel %vm1164, %v1165, %v1156
  %v1167 = vsel %vm1160, %v1163, %v1166
  %v1168 = vsel %vm1157, nan, %v1167
  %v1169 = vld [vmem:[%s3] sm:$0xff]
  %v1170 = vld [vmem:[%s3 + $0x8] sm:$0xff]
  %v1171 = vld [vmem:[%s3 + $0x10] sm:$0xff]
  %v1172 = vld [vmem:[%s3 + $0x18] sm:$0xff]
  %v1173 = vld [vmem:[%s3 + $0x20] sm:$0xff]
  %v1174 = vld [vmem:[%s3 + $0x28] sm:$0xff]
  %v1175 = vld [vmem:[%s3 + $0x30] sm:$0xff]
  %v1176 = vld [vmem:[%s3 + $0x38] sm:$0xff]
  %vm1177 = vcmask 523264
  %v1179 = vsel %vm1177, %v1169, 0
  %v1182 = vsel %vm1177, %v1170, 0
  %v1185 = vsel %vm1177, %v1171, 0
  %v1188 = vsel %vm1177, %v1172, 0
  %v1191 = vsel %vm1177, %v1173, 0
  %v1194 = vsel %vm1177, %v1174, 0
  %v1197 = vsel %vm1177, %v1175, 0
  %v1200 = vsel %vm1177, %v1176, 0
  %1202 = vmatprep.subr.mxu0 0.0
  %1203 = vmatpush1.msra.mxu0 0.0
  %1204 = vmatprep.subr.mxu0 0.0
  %1205 = vmatpush1.msra.mxu0 0.0
  %1206 = vmatprep.subr.mxu0 0.0
  %1207 = vmatpush1.msra.mxu0 0.0
  %1208 = vmatprep.subr.mxu0 0.0
  %1209 = vmatpush1.msra.mxu0 0.0
  %1210 = vmatprep.subr.mxu0 0.0
  %1211 = vmatpush1.msra.mxu0 0.0
  %1212 = vmatprep.subr.mxu0 0.0
  %1213 = vmatpush1.msra.mxu0 0.0
  %1214 = vmatprep.subr.mxu0 0.0
  %1215 = vmatpush1.msra.mxu0 0.0
  %1216 = vmatprep.subr.mxu0 0.0
  %1217 = vmatpush1.msra.mxu0 0.0
  %1218 = vmatprep.subr.mxu0 0.0
  %1219 = vmatpush1.msra.mxu0 %v1168
  %1220 = vmatprep.subr.mxu0 0.0
  %1221 = vmatpush1.msra.mxu0 %v1064
  %1222 = vmatprep.subr.mxu0 0.0
  %1223 = vmatpush1.msra.mxu0 %v960
  %1224 = vmatprep.subr.mxu0 0.0
  %1225 = vmatpush1.msra.mxu0 %v856
  %1226 = vmatprep.subr.mxu0 0.0
  %1227 = vmatpush1.msra.mxu0 %v752
  %1228 = vmatprep.subr.mxu0 0.0
  %1229 = vmatpush1.msra.mxu0 %v648
  %1230 = vmatprep.subr.mxu0 0.0
  %1231 = vmatpush1.msra.mxu0 %v544
  %1232 = vmatprep.subr.mxu0 0.0
  %1233 = vmatpush1.msra.mxu0 %v440
  %1234 = vmatprep.subr.mxu0 0.0
  %1235 = vmatpush2.msra.mxu0 0.0
  %1236 = vmatprep.subr.mxu0 0.0
  %1237 = vmatpush2.msra.mxu0 0.0
  %1238 = vmatprep.subr.mxu0 0.0
  %1239 = vmatpush2.msra.mxu0 0.0
  %1240 = vmatprep.subr.mxu0 0.0
  %1241 = vmatpush2.msra.mxu0 0.0
  %1242 = vmatprep.subr.mxu0 0.0
  %1243 = vmatpush2.msra.mxu0 0.0
  %1244 = vmatprep.subr.mxu0 0.0
  %1245 = vmatpush2.msra.mxu0 0.0
  %1246 = vmatprep.subr.mxu0 0.0
  %1247 = vmatpush2.msra.mxu0 0.0
  %1248 = vmatprep.subr.mxu0 0.0
  %1249 = vmatpush2.msra.mxu0 0.0
  %1250 = vmatprep.subr.mxu0 0.0
  %1251 = vmatpush2.msra.mxu0 0.0
  %1252 = vmatprep.subr.mxu0 0.0
  %1253 = vmatpush2.msra.mxu0 0.0
  %1254 = vmatprep.subr.mxu0 0.0
  %1255 = vmatpush2.msra.mxu0 0.0
  %1256 = vmatprep.subr.mxu0 0.0
  %1257 = vmatpush2.msra.mxu0 0.0
  %1258 = vmatprep.subr.mxu0 0.0
  %1259 = vmatpush2.msra.mxu0 0.0
  %1260 = vmatprep.subr.mxu0 0.0
  %1261 = vmatpush2.msra.mxu0 0.0
  %1262 = vmatprep.subr.mxu0 0.0
  %1263 = vmatpush2.msra.mxu0 0.0
  %1264 = vmatprep.subr.mxu0 0.0
  %1265 = vmatpush2.msra.mxu0 0.0
  %1266 = vmatprep.mubr.f32.mxu0 0.0
  %1267 = vmatmul.mubr.f32.gmra.mxu0 %v1179
  %v1268 = vpop.f32.mrf.mxu0
  %v1269 = vadd.f32 0.0, %v1268
  %v1270 = vpop.f32.mrf.mxu0
  %1271 = vmatprep.mubr.f32.mxu0 0.0
  %1272 = vmatmul.mubr.f32.gmra.mxu0 %v1182
  %v1273 = vpop.f32.mrf.mxu0
  %v1274 = vadd.f32 0.0, %v1273
  %v1275 = vpop.f32.mrf.mxu0
  %1276 = vmatprep.mubr.f32.mxu0 0.0
  %1277 = vmatmul.mubr.f32.gmra.mxu0 %v1185
  %v1278 = vpop.f32.mrf.mxu0
  %v1279 = vadd.f32 0.0, %v1278
  %v1280 = vpop.f32.mrf.mxu0
  %1281 = vmatprep.mubr.f32.mxu0 0.0
  %1282 = vmatmul.mubr.f32.gmra.mxu0 %v1188
  %v1283 = vpop.f32.mrf.mxu0
  %v1284 = vadd.f32 0.0, %v1283
  %v1285 = vpop.f32.mrf.mxu0
  %1286 = vmatprep.mubr.f32.mxu0 0.0
  %1287 = vmatmul.mubr.f32.gmra.mxu0 %v1191
  %v1288 = vpop.f32.mrf.mxu0
  %v1289 = vadd.f32 0.0, %v1288
  %v1290 = vpop.f32.mrf.mxu0
  %1291 = vmatprep.mubr.f32.mxu0 0.0
  %1292 = vmatmul.mubr.f32.gmra.mxu0 %v1194
  %v1293 = vpop.f32.mrf.mxu0
  %v1294 = vadd.f32 0.0, %v1293
  %v1295 = vpop.f32.mrf.mxu0
  %1296 = vmatprep.mubr.f32.mxu0 0.0
  %1297 = vmatmul.mubr.f32.gmra.mxu0 %v1197
  %v1298 = vpop.f32.mrf.mxu0
  %v1299 = vadd.f32 0.0, %v1298
  %v1300 = vpop.f32.mrf.mxu0
  %1301 = vmatprep.mubr.f32.mxu0 0.0
  %1302 = vmatmul.mubr.f32.gmra.mxu0 %v1200
  %v1303 = vpop.f32.mrf.mxu0
  %v1304 = vadd.f32 0.0, %v1303
  %v1305 = vpop.f32.mrf.mxu0
  %1306 = vdwg.mxu0
  %v1307 = vadd.f32 %v259, %v1269
  %v1308 = vadd.f32 %v264, %v1274
  %v1309 = vadd.f32 %v269, %v1279
  %v1310 = vadd.f32 %v274, %v1284
  %v1311 = vadd.f32 %v279, %v1289
  %v1312 = vadd.f32 %v284, %v1294
  %v1313 = vadd.f32 %v289, %v1299
  %v1314 = vadd.f32 %v294, %v1304
  %v1315 = vld [vmem:[%s4] sm:$0xff]
  %v1316 = vld [vmem:[%s4 + $0x8] sm:$0xff]
  %v1317 = vld [vmem:[%s4 + $0x10] sm:$0xff]
  %v1318 = vld [vmem:[%s4 + $0x18] sm:$0xff]
  %v1319 = vld [vmem:[%s4 + $0x20] sm:$0xff]
  %v1320 = vld [vmem:[%s4 + $0x28] sm:$0xff]
  %v1321 = vld [vmem:[%s4 + $0x30] sm:$0xff]
  %v1322 = vld [vmem:[%s4 + $0x38] sm:$0xff]
  %v1323 = vld [vmem:[%s5] sm:$0x1]
  %v1325 = vlaneseq
  %v1326 = vshrl.u32 %v1325, 7
  %v1327 = vsub.s32 0, %v1326
  %v1328 = vrot.slane %v1323, %v1327
  %1330 = vxpose.xlu0.b32.start [1/16] %v1307, 128
  %1331 = vxpose.xlu0.b32.cont [2/16] %v1308, 128
  %1332 = vxpose.xlu0.b32.cont [3/16] %v1309, 128
  %1333 = vxpose.xlu0.b32.cont [4/16] %v1310, 128
  %1334 = vxpose.xlu0.b32.cont [5/16] %v1311, 128
  %1335 = vxpose.xlu0.b32.cont [6/16] %v1312, 128
  %1336 = vxpose.xlu0.b32.cont [7/16] %v1313, 128
  %1337 = vxpose.xlu0.b32.cont [8/16] %v1314, 128
  %1338 = vxpose.xlu0.b32.cont [9/16] 0.0, 128
  %1339 = vxpose.xlu0.b32.cont [10/16] 0.0, 128
  %1340 = vxpose.xlu0.b32.cont [11/16] 0.0, 128
  %1341 = vxpose.xlu0.b32.cont [12/16] 0.0, 128
  %1342 = vxpose.xlu0.b32.cont [13/16] 0.0, 128
  %1343 = vxpose.xlu0.b32.cont [14/16] 0.0, 128
  %1344 = vxpose.xlu0.b32.cont [15/16] 0.0, 128
  %1345 = vxpose.xlu0.b32.end [16/16] 0.0, 128
  %v1346 = vpop.trf.xlu0
  %v1347 = vpop.trf.xlu0
  %v1348 = vpop.trf.xlu0
  %v1349 = vpop.trf.xlu0
  %v1350 = vpop.trf.xlu0
  %v1351 = vpop.trf.xlu0
  %v1352 = vpop.trf.xlu0
  %v1353 = vpop.trf.xlu0
  %v1354 = vpop.trf.xlu0
  %v1355 = vpop.trf.xlu0
  %v1356 = vpop.trf.xlu0
  %v1357 = vpop.trf.xlu0
  %v1358 = vpop.trf.xlu0
  %v1359 = vpop.trf.xlu0
  %v1360 = vpop.trf.xlu0
  %v1361 = vpop.trf.xlu0
  %v1363 = vsel %vm1177, %v1346, 0
  %v1366 = vsel %vm1177, %v1347, 0
  %1368 = vmatprep.subr.mxu0 0.0
  %1369 = vmatpush1.msra.mxu0 0.0
  %1370 = vmatprep.subr.mxu0 0.0
  %1371 = vmatpush1.msra.mxu0 0.0
  %1372 = vmatprep.subr.mxu0 0.0
  %1373 = vmatpush1.msra.mxu0 0.0
  %1374 = vmatprep.subr.mxu0 0.0
  %1375 = vmatpush1.msra.mxu0 0.0
  %1376 = vmatprep.subr.mxu0 0.0
  %1377 = vmatpush1.msra.mxu0 0.0
  %1378 = vmatprep.subr.mxu0 0.0
  %1379 = vmatpush1.msra.mxu0 0.0
  %1380 = vmatprep.subr.mxu0 0.0
  %1381 = vmatpush1.msra.mxu0 0.0
  %1382 = vmatprep.subr.mxu0 0.0
  %1383 = vmatpush1.msra.mxu0 0.0
  %1384 = vmatprep.subr.mxu0 0.0
  %1385 = vmatpush1.msra.mxu0 %v1322
  %1386 = vmatprep.subr.mxu0 0.0
  %1387 = vmatpush1.msra.mxu0 %v1321
  %1388 = vmatprep.subr.mxu0 0.0
  %1389 = vmatpush1.msra.mxu0 %v1320
  %1390 = vmatprep.subr.mxu0 0.0
  %1391 = vmatpush1.msra.mxu0 %v1319
  %1392 = vmatprep.subr.mxu0 0.0
  %1393 = vmatpush1.msra.mxu0 %v1318
  %1394 = vmatprep.subr.mxu0 0.0
  %1395 = vmatpush1.msra.mxu0 %v1317
  %1396 = vmatprep.subr.mxu0 0.0
  %1397 = vmatpush1.msra.mxu0 %v1316
  %1398 = vmatprep.subr.mxu0 0.0
  %1399 = vmatpush1.msra.mxu0 %v1315
  %1400 = vmatprep.subr.mxu0 0.0
  %1401 = vmatpush2.msra.mxu0 0.0
  %1402 = vmatprep.subr.mxu0 0.0
  %1403 = vmatpush2.msra.mxu0 0.0
  %1404 = vmatprep.subr.mxu0 0.0
  %1405 = vmatpush2.msra.mxu0 0.0
  %1406 = vmatprep.subr.mxu0 0.0
  %1407 = vmatpush2.msra.mxu0 0.0
  %1408 = vmatprep.subr.mxu0 0.0
  %1409 = vmatpush2.msra.mxu0 0.0
  %1410 = vmatprep.subr.mxu0 0.0
  %1411 = vmatpush2.msra.mxu0 0.0
  %1412 = vmatprep.subr.mxu0 0.0
  %1413 = vmatpush2.msra.mxu0 0.0
  %1414 = vmatprep.subr.mxu0 0.0
  %1415 = vmatpush2.msra.mxu0 0.0
  %1416 = vmatprep.subr.mxu0 0.0
  %1417 = vmatpush2.msra.mxu0 0.0
  %1418 = vmatprep.subr.mxu0 0.0
  %1419 = vmatpush2.msra.mxu0 0.0
  %1420 = vmatprep.subr.mxu0 0.0
  %1421 = vmatpush2.msra.mxu0 0.0
  %1422 = vmatprep.subr.mxu0 0.0
  %1423 = vmatpush2.msra.mxu0 0.0
  %1424 = vmatprep.subr.mxu0 0.0
  %1425 = vmatpush2.msra.mxu0 0.0
  %1426 = vmatprep.subr.mxu0 0.0
  %1427 = vmatpush2.msra.mxu0 0.0
  %1428 = vmatprep.subr.mxu0 0.0
  %1429 = vmatpush2.msra.mxu0 0.0
  %1430 = vmatprep.subr.mxu0 0.0
  %1431 = vmatpush2.msra.mxu0 0.0
  %1432 = vmatprep.mubr.f32.mxu0 0.0
  %1433 = vmatmul.mubr.f32.gmra.mxu0 %v1363
  %v1434 = vpop.f32.mrf.mxu0
  %v1435 = vadd.f32 %v1328, %v1434
  %v1436 = vpop.f32.mrf.mxu0
  %1437 = vmatprep.mubr.f32.mxu0 0.0
  %1438 = vmatmul.mubr.f32.gmra.mxu0 %v1366
  %v1439 = vpop.f32.mrf.mxu0
  %v1440 = vadd.f32 %v1328, %v1439
  %v1441 = vpop.f32.mrf.mxu0
  %1442 = vdwg.mxu0
  %1443 = vst.msk [vmem:[%s6] sm:$0xff] %vm137, %v1435
  %1444 = vst.msk [vmem:[%s6 + $0x8] sm:$0xff] %vm137, %v1440
  // Predicated region
  $region26: #{_forward.1} parent=0 // pred_check
    _
  $region27: #{_forward.1} parent=0 // pred_check_branch
    %1446 = sbr.rel (0) target = $region29
  $region28: #{_forward.1} parent=0 // pred_region
    _
  $region29: #{_forward.1} parent=0 // pred_fallthru
    _
  // Predicated region
  $region30: #{_forward.1} parent=0 // pred_check
    _
  $region31: #{_forward.1} parent=0 // pred_check_branch
    %1448 = sbr.rel (0) target = $region33
  $region32: #{_forward.1} parent=0 // pred_region
    _
  $region33: #{_forward.1} parent=0 // pred_fallthru
    _

</llo_original>
